<compile_context>
chip_gen: v6e
topology: v6e:2x2x1
jax: 0.10.0
libtpu: 0.0.40
codegen_flags: <defaults>
</compile_context>

<pallas_src>
import functools

import jax
import jax.numpy as jnp
from jax.experimental import pallas as pl
from jax.experimental.pallas import tpu as pltpu

LANE = 128
SUBLANE = 8
# ~2 MiB of input per operand per grid step: per-step pipeline overhead
# (~0.35us) stays <10% of the block's HBM time on v5e/v6e/v7x.
TARGET_BLOCK_BYTES = 2 * 1024 * 1024


def _round_down_sublane(r):
    return (r // SUBLANE) * SUBLANE


def _myloss2_kernel(x_ref, y_ref, out_ref, *, thresh, alpha, inv_thresh,
                    inv_2alpha, sub_rows):
    # In-kernel cast: inputs are DMA'd in their native dtype (halves HBM
    # traffic for bf16/fp16 inputs); math is f32 like the PyTorch reference.
    x = x_ref[...].astype(jnp.float32)
    y = y_ref[...].astype(jnp.float32)
    t = jnp.abs(x - y)
    hi = thresh + alpha

    # Branch 1: quadratic region below thresh. Skip the *1/thresh multiply at
    # trace time when thresh == 1.
    below = t < thresh
    quad = t * t if thresh == 1.0 else t * t * inv_thresh
    t = jnp.where(below, quad, t)

    # Branch 2 on the MODIFIED t (PyTorch in-place order). Values rewritten by
    # branch 1 satisfy t**2/thresh <= t < thresh (thresh > 0), so after the
    # rewrite "t >= thresh" is exactly ~below: reuse the compare.
    tag = jnp.logical_and(jnp.logical_not(below), t <= hi)
    dt = t - thresh
    # Algebraically identical to 2*t - dt**2/(2*alpha) - thresh, one VALU op
    # fewer (these VPUs have no f32 FMA to fold it).
    t = jnp.where(tag, dt * (2.0 - dt * inv_2alpha) + thresh, t)

    # Branch 3: shift (again on the modified t) above thresh + alpha.
    t = jnp.where(t > hi, t + 0.5 * alpha, t)

    # (8, 128) lane/sublane-dense partial sum per block. The reshape splits the
    # sublane axis on an (8,128)-tile boundary (free); the axis-0 reduction is
    # plain vreg adds. Avoids a masked 1-row store and the 8->1 XLU reduce.
    out_ref[...] = jnp.sum(t.reshape(sub_rows, SUBLANE, LANE), axis=0)


def _pointwise_loss(x, y, thresh, alpha):
    """Plain-JAX transform reproducing the sequential in-place branch order."""
    t = jnp.abs(x.astype(jnp.float32) - y.astype(jnp.float32))
    t = jnp.where(t < thresh, t * t / thresh, t)
    tag = (t <= thresh + alpha) & (t >= thresh)
    t = jnp.where(tag, t * 2.0 - (t - thresh) ** 2 / (2.0 * alpha) - thresh, t)
    t = jnp.where(t > thresh + alpha, t + alpha / 2.0, t)
    return t


def myloss2(input1, input2, thresh=1.0, alpha=2.0):
    assert input1.shape == input2.shape
    thresh = float(thresh)
    alpha = float(alpha)
    # Branch algebra (and the "untouched elements contribute correctly"
    # reasoning) assumes a positive threshold, as in the module's default.
    assert thresh > 0.0, "MyLoss2 kernel requires thresh > 0"

    n = input1.size
    flat1 = input1.reshape(-1)  # contiguous flatten: free
    flat2 = input2.reshape(-1)

    rows = n // LANE
    lane_tail = n - rows * LANE

    if rows < SUBLANE:
        # Tiny input: not worth a kernel launch.
        return jnp.sum(_pointwise_loss(flat1, flat2, thresh, alpha)) / n

    itemsize = jnp.dtype(input1.dtype).itemsize
    # ~2 MiB per operand per step (4096 rows f32, 8192 rows bf16), clamped so
    # the grid always has >= 2 blocks (work for both v7x TensorCores).
    base_rows = max(SUBLANE,
                    _round_down_sublane(TARGET_BLOCK_BYTES // (LANE * itemsize)))
    half_rows = max(SUBLANE, _round_down_sublane(rows // 2))
    block_rows = min(base_rows, half_rows)
    num_blocks = rows // block_rows
    kernel_rows = num_blocks * block_rows
    kernel_elems = kernel_rows * LANE

    if lane_tail == 0:
        # Zero-copy lane-dense view: the grid simply stops at the last full
        # block and never touches the (< block_rows) leftover rows.
        a2 = flat1.reshape(rows, LANE)
        b2 = flat2.reshape(rows, LANE)
    else:
        # numel % 128 != 0: a (., 128) view cannot alias the input, so XLA
        # materializes one prefix copy per input (no pad, no in-kernel mask).
        # TODO(synk): fully zero-copy handling of numel % 128 != 0 via rank-1
        # blocks once dense 1-D layouts are confirmed on Mosaic.
        a2 = flat1[:kernel_elems].reshape(kernel_rows, LANE)
        b2 = flat2[:kernel_elems].reshape(kernel_rows, LANE)

    kern = functools.partial(
        _myloss2_kernel,
        thresh=thresh,
        alpha=alpha,
        inv_thresh=1.0 / thresh,
        inv_2alpha=1.0 / (2.0 * alpha),
        sub_rows=block_rows // SUBLANE,
    )

    cost = pl.CostEstimate(
        flops=16 * kernel_elems,
        transcendentals=0,
        bytes_accessed=2 * kernel_elems * itemsize
        + num_blocks * SUBLANE * LANE * 4,
    )

    partials = pl.pallas_call(
        kern,
        out_shape=jax.ShapeDtypeStruct((num_blocks * SUBLANE, LANE),
                                       jnp.float32),
        grid_spec=pltpu.PrefetchScalarGridSpec(
            num_scalar_prefetch=0,
            grid=(num_blocks,),
            in_specs=[
                pl.BlockSpec((block_rows, LANE), lambda i: (i, 0)),
                pl.BlockSpec((block_rows, LANE), lambda i: (i, 0)),
            ],
            out_specs=pl.BlockSpec((SUBLANE, LANE), lambda i: (i, 0)),
        ),
        compiler_params=pltpu.CompilerParams(
            dimension_semantics=("parallel",),
            vmem_limit_bytes=40 * 1024 * 1024,
        ),
        cost_estimate=cost,
    )(a2, b2)

    total = jnp.sum(partials)

    # Remainder (< block_rows*128 + 127 elements): leftover full rows past the
    # last full block plus the <128-element lane tail, summed in plain JAX.
    if kernel_elems < n:
        tail1 = flat1[kernel_elems:]
        tail2 = flat2[kernel_elems:]
        total = total + jnp.sum(_pointwise_loss(tail1, tail2, thresh, alpha))

    return total / n


def _myloss2_ref(input1, input2, thresh=1.0, alpha=2.0):
    # Pure-JAX reference reproducing the in-place mutation order.
    return jnp.mean(_pointwise_loss(input1, input2, float(thresh), float(alpha)))


if __name__ == "__main__":
    key = jax.random.PRNGKey(0)
    k1, k2, k3, k4, k5, k6 = jax.random.split(key, 6)

    # 1) Small lane-aligned shape; scaled so all three branches are exercised.
    x1 = 3.0 * jax.random.normal(k1, (2, 4, 16, 16), dtype=jnp.float32)
    x2 = 3.0 * jax.random.normal(k2, (2, 4, 16, 16), dtype=jnp.float32)
    out = jax.block_until_ready(myloss2(x1, x2, thresh=1.0, alpha=2.0))
    ref = jax.block_until_ready(_myloss2_ref(x1, x2, thresh=1.0, alpha=2.0))
    assert jnp.allclose(out, ref, rtol=1e-5, atol=1e-5), (out, ref)

    # 2) Lane-misaligned total size (n % 128 != 0): exercises the prefix path
    #    and the plain-JAX remainder (rows + lane tail).
    y1 = 3.0 * jax.random.normal(k3, (4, 5, 89, 91), dtype=jnp.float32)
    y2 = 3.0 * jax.random.normal(k4, (4, 5, 89, 91), dtype=jnp.float32)
    out2 = jax.block_until_ready(myloss2(y1, y2, thresh=1.0, alpha=2.0))
    ref2 = jax.block_until_ready(_myloss2_ref(y1, y2, thresh=1.0, alpha=2.0))
    assert jnp.allclose(out2, ref2, rtol=1e-5, atol=1e-5), (out2, ref2)

    # 3) Lane-aligned but with leftover full rows past the last full block:
    #    exercises the zero-copy view + JAX row-tail path.
    z1 = 3.0 * jax.random.normal(k5, (3, 3, 40, 128), dtype=jnp.float32)
    z2 = 3.0 * jax.random.normal(k6, (3, 3, 40, 128), dtype=jnp.float32)
    out3 = jax.block_until_ready(myloss2(z1, z2, thresh=1.0, alpha=2.0))
    ref3 = jax.block_until_ready(_myloss2_ref(z1, z2, thresh=1.0, alpha=2.0))
    assert jnp.allclose(out3, ref3, rtol=1e-5, atol=1e-5), (out3, ref3)

    print("KERNEL_OK")
</pallas_src>

<mosaic_0001>
module attributes {stable_mosaic.version = 11 : i64} {
  func.func @_myloss2_kernel(%arg0: i32, %arg1: memref<8x128xf32, #tpu.memory_space<vmem>>, %arg2: memref<8x128xf32, #tpu.memory_space<vmem>>, %arg3: memref<8x128xf32, #tpu.memory_space<vmem>>) attributes {dimension_semantics = [#tpu.dimension_semantics<parallel>], iteration_bounds = array<i64: 2>, scalar_prefetch = 0 : i64, scratch_operands = 0 : i64, tpu.core_type = #tpu.core_type<tc>, window_params = [{transform_indices = @transform_0, window_bounds = array<i64: 8, 128>}, {transform_indices = @transform_1, window_bounds = array<i64: 8, 128>}, {transform_indices = @transform_2, window_bounds = array<i64: 8, 128>}]} {
    %c0 = arith.constant 0 : index
    %c0_0 = arith.constant 0 : index
    %0 = vector.load %arg1[%c0, %c0_0] : memref<8x128xf32, #tpu.memory_space<vmem>>, vector<8x128xf32>
    %c0_1 = arith.constant 0 : index
    %c0_2 = arith.constant 0 : index
    %1 = vector.load %arg2[%c0_1, %c0_2] : memref<8x128xf32, #tpu.memory_space<vmem>>, vector<8x128xf32>
    %2 = arith.subf %0, %1 : vector<8x128xf32>
    %3 = math.absf %2 : vector<8x128xf32>
    %cst = arith.constant 1.000000e+00 : f32
    %4 = vector.broadcast %cst : f32 to vector<8x128xf32>
    %5 = arith.cmpf olt, %3, %4 : vector<8x128xf32>
    %6 = arith.mulf %3, %3 : vector<8x128xf32>
    %7 = arith.select %5, %6, %3 : vector<8x128xi1>, vector<8x128xf32>
    %cst_3 = arith.constant dense<true> : vector<8x128xi1>
    %8 = arith.xori %5, %cst_3 : vector<8x128xi1>
    %cst_4 = arith.constant 3.000000e+00 : f32
    %9 = vector.broadcast %cst_4 : f32 to vector<8x128xf32>
    %10 = arith.cmpf ole, %7, %9 : vector<8x128xf32>
    %11 = arith.andi %8, %10 : vector<8x128xi1>
    %cst_5 = arith.constant 1.000000e+00 : f32
    %12 = vector.broadcast %cst_5 : f32 to vector<8x128xf32>
    %13 = arith.subf %7, %12 : vector<8x128xf32>
    %cst_6 = arith.constant 2.500000e-01 : f32
    %14 = vector.broadcast %cst_6 : f32 to vector<8x128xf32>
    %15 = arith.mulf %13, %14 : vector<8x128xf32>
    %cst_7 = arith.constant 2.000000e+00 : f32
    %16 = vector.broadcast %cst_7 : f32 to vector<8x128xf32>
    %17 = arith.subf %16, %15 : vector<8x128xf32>
    %18 = arith.mulf %13, %17 : vector<8x128xf32>
    %cst_8 = arith.constant 1.000000e+00 : f32
    %19 = vector.broadcast %cst_8 : f32 to vector<8x128xf32>
    %20 = arith.addf %18, %19 : vector<8x128xf32>
    %21 = arith.select %11, %20, %7 : vector<8x128xi1>, vector<8x128xf32>
    %cst_9 = arith.constant 3.000000e+00 : f32
    %22 = vector.broadcast %cst_9 : f32 to vector<8x128xf32>
    %23 = arith.cmpf ogt, %21, %22 : vector<8x128xf32>
    %cst_10 = arith.constant 1.000000e+00 : f32
    %24 = vector.broadcast %cst_10 : f32 to vector<8x128xf32>
    %25 = arith.addf %21, %24 : vector<8x128xf32>
    %26 = arith.select %23, %25, %21 : vector<8x128xi1>, vector<8x128xf32>
    %27 = vector.shape_cast %26 : vector<8x128xf32> to vector<1x8x128xf32>
    %cst_11 = arith.constant dense<0.000000e+00> : vector<8x128xf32>
    %28 = vector.multi_reduction <add>, %27, %cst_11 [0] : vector<1x8x128xf32> to vector<8x128xf32>
    %c0_12 = arith.constant 0 : index
    %c0_13 = arith.constant 0 : index
    %29 = vector.load %arg3[%c0_12, %c0_13] : memref<8x128xf32, #tpu.memory_space<vmem>>, vector<8x128xf32>
    tpu.vector_store %arg3[%c0_12, %c0_13], %28 {strides = array<i32>} : memref<8x128xf32, #tpu.memory_space<vmem>>, vector<8x128xf32>,
    return
  }
  func.func @transform_0(%arg0: i32) -> (i32, i32) {
    %c0_i32 = arith.constant 0 : i32
    %c0_i32_0 = arith.constant 0 : i32
    return %arg0, %c0_i32 : i32, i32
  }
  func.func @transform_1(%arg0: i32) -> (i32, i32) {
    %c0_i32 = arith.constant 0 : i32
    %c0_i32_0 = arith.constant 0 : i32
    return %arg0, %c0_i32 : i32, i32
  }
  func.func @transform_2(%arg0: i32) -> (i32, i32) {
    %c0_i32 = arith.constant 0 : i32
    %c0_i32_0 = arith.constant 0 : i32
    return %arg0, %c0_i32 : i32, i32
  }
}

</mosaic_0001>

<llo_original>
// kernel: tpu_custom_call.1
$region0: #{tpu_custom_call.1}
  #allocation0 [shape = 'u32[]', space=smem, size = 0x4, offset = 0x4, fixed_abs, tag = 'smem constant byte address 0x4 - core index']
  #allocation1 [shape = 'u32[144,128]{1,0:T(1,128)}', space=vmem, size = 0x12000, scoped, tag = 'internal scratch']
  %s0 = inlined_call_operand.hbm [shape: f32[16,128], index: 0, kind: input, shape index: {}]
  %s1 = inlined_call_operand.hbm [shape: f32[16,128], index: 1, kind: input, shape index: {}]
  %s2 = inlined_call_operand.hbm [shape: f32[16,128], index: 2, kind: output, shape index: {}]
  %s3 = sld [smem:[#allocation0]]
  $region49: #{tpu_custom_call.1} parent=0
    _
  %s5 = ssub.s32 1, %s3
  %s6 = scalar_select 0, %s5, %s3
  $region1: #{tpu_custom_call.1} parent=0
    #allocation2 [shape = 'u8[8192]{0}', space=vmem, size = 0x2000, scoped, tag = 'input window, operand 0']
    #allocation3 [shape = 's32[2]{0}', space=sflag, size = 0x8, scoped, tag = 'scoped memory for tpu_custom_call.1']
    #allocation4 [shape = 's32[2]{0}', space=sflag, size = 0x8, scoped, tag = 'scoped memory for tpu_custom_call.1']
    #allocation5 [shape = 'u8[8192]{0}', space=vmem, size = 0x2000, scoped, tag = 'input window, operand 1']
    #allocation6 [shape = 's32[2]{0}', space=sflag, size = 0x8, scoped, tag = 'scoped memory for tpu_custom_call.1']
    #allocation7 [shape = 'u8[8192]{0}', space=vmem, size = 0x2000, scoped, tag = 'output window, operand 0']
    %7 = vsyncpa [#allocation3], 0
    %s8 = scalar_lea.sflag [#allocation3], 1
    %9 = vsyncpa %s8, 0
    %10 = vsyncpa [#allocation6], 0
    %s11 = scalar_lea.sflag [#allocation6], 1
    %12 = vsyncpa %s11, 0
    %13 = vsyncpa [#allocation4], 0
    %s14 = scalar_lea.sflag [#allocation4], 1
    %15 = vsyncpa %s14, 0
    loop: start=0, step=1, limit=4
    $region2: #{tpu_custom_call.1} parent=1 // loop_pre_header
      _
    $region3: #{tpu_custom_call.1} parent=1 // loop_header
      %s17 = sphi 0, %s21
      %p18 = scmp.ge.s32.totalorder %s17, 4
      %s27 = sphi 0, %s29
      %s30 = sphi 0, %s27
      %s31 = sphi 0, %s30
      %s47 = sphi 0, %s31
      %s53 = sphi 0, %s55
      %s56 = sphi 0, %s53
      %s57 = sphi 0, %s56
      %s73 = sphi 0, %s57
      %s79 = sphi 0, %s81
      %s82 = sphi 0, %s79
      %s83 = sphi 0, %s82
      %s99 = sphi 0, %s83
    $region4: #{tpu_custom_call.1} parent=1 // loop_header_branch
      %20 = sbr.rel (%p18) target = $region8
    $region5: #{tpu_custom_call.1} parent=1 // loop_body
      %s22 = ssub.s32 %s17, 1
      %s23 = ssub.s32 %s17, 2
      %s24 = sadd.s32 %s17, 1
      %s25 = ssub.s32 %s17, %s24
      %p26 = scmp.eq.s32.totalorder %s25, 0
      %s28 = sadd.s32 %s27, 1
      %s29 = scalar_select %p26, %s27, %s28
      %p32 = pneg %p26
      %p33 = scmp.eq.s32.totalorder %s17, 1
      %p34 = por %p32, %p33
      %p35 = scmp.ne.s32.totalorder %s27, %s30
      %p36 = scmp.eq.s32.totalorder %s17, 0
      %p37 = por %p35, %p36
      %p38 = scmp.ne.s32.totalorder %s27, %s30
      %p39 = scmp.eq.s32.totalorder %s22, 1
      %p40 = por %p38, %p39
      %p41 = scmp.ne.s32.totalorder %s30, %s31
      %p42 = scmp.eq.s32.totalorder %s22, 0
      %p43 = por %p41, %p42
      %p44 = scmp.ne.s32.totalorder %s30, %s31
      %p45 = scmp.eq.s32.totalorder %s23, 1
      %p46 = por %p44, %p45
      %p48 = scmp.ne.s32.totalorder %s31, %s47
      %p49 = scmp.eq.s32.totalorder %s23, 0
      %p50 = por %p48, %p49
      %s51 = ssub.s32 %s17, %s24
      %p52 = scmp.eq.s32.totalorder %s51, 0
      %s54 = sadd.s32 %s53, 1
      %s55 = scalar_select %p52, %s53, %s54
      %p58 = pneg %p52
      %p59 = scmp.eq.s32.totalorder %s17, 1
      %p60 = por %p58, %p59
      %p61 = scmp.ne.s32.totalorder %s53, %s56
      %p62 = scmp.eq.s32.totalorder %s17, 0
      %p63 = por %p61, %p62
      %p64 = scmp.ne.s32.totalorder %s53, %s56
      %p65 = scmp.eq.s32.totalorder %s22, 1
      %p66 = por %p64, %p65
      %p67 = scmp.ne.s32.totalorder %s56, %s57
      %p68 = scmp.eq.s32.totalorder %s22, 0
      %p69 = por %p67, %p68
      %p70 = scmp.ne.s32.totalorder %s56, %s57
      %p71 = scmp.eq.s32.totalorder %s23, 1
      %p72 = por %p70, %p71
      %p74 = scmp.ne.s32.totalorder %s57, %s73
      %p75 = scmp.eq.s32.totalorder %s23, 0
      %p76 = por %p74, %p75
      %s77 = ssub.s32 %s17, %s24
      %p78 = scmp.eq.s32.totalorder %s77, 0
      %s80 = sadd.s32 %s79, 1
      %s81 = scalar_select %p78, %s79, %s80
      %p84 = pneg %p78
      %p85 = scmp.eq.s32.totalorder %s17, 1
      %p86 = por %p84, %p85
      %p87 = scmp.ne.s32.totalorder %s79, %s82
      %p88 = scmp.eq.s32.totalorder %s17, 0
      %p89 = por %p87, %p88
      %p90 = scmp.ne.s32.totalorder %s79, %s82
      %p91 = scmp.eq.s32.totalorder %s22, 1
      %p92 = por %p90, %p91
      %p93 = scmp.ne.s32.totalorder %s82, %s83
      %p94 = scmp.eq.s32.totalorder %s22, 0
      %p95 = por %p93, %p94
      %p96 = scmp.ne.s32.totalorder %s82, %s83
      %p97 = scmp.eq.s32.totalorder %s23, 1
      %p98 = por %p96, %p97
      %p100 = scmp.ne.s32.totalorder %s83, %s99
      %p101 = scmp.eq.s32.totalorder %s23, 0
      %p102 = por %p100, %p101
      %p103 = scmp.le.s32.totalorder 1, %s17
      %p104 = scmp.lt.s32.totalorder %s17, 3
      %p105 = pnand %p103, %p104
      %p106 = pneg %p105
      // Predicated region
      $region9: #{tpu_custom_call.1} parent=5 // pred_check
        _
      $region10: #{tpu_custom_call.1} parent=5 // pred_check_branch
        %108 = sbr.rel (%p105) target = $region12
      $region11: #{tpu_custom_call.1} parent=5 // pred_region
        %s109 = ssub.s32 %s17, 1
      $region12: #{tpu_custom_call.1} parent=5 // pred_fallthru
        _
      %p110 = scmp.lt.s32.totalorder %s17, 2
      // Predicated region
      $region13: #{tpu_custom_call.1} parent=5 // pred_check
        %p111 = pneg %p110
      $region14: #{tpu_custom_call.1} parent=5 // pred_check_branch
        %113 = sbr.rel (%p111) target = $region16
      $region15: #{tpu_custom_call.1} parent=5 // pred_region
        // Predicated region
        $region17: #{tpu_custom_call.1} parent=15 // pred_check
          %p114 = pneg %p37
        $region18: #{tpu_custom_call.1} parent=15 // pred_check_branch
          %116 = sbr.rel (%p114) target = $region20
        $region19: #{tpu_custom_call.1} parent=15 // pred_region
          %s117 = sand.u32 %s27, 1
          %s118 = scalar_lea.sflag [#allocation3], %s117
          %s119 = sand.u32 %s27, 1
          %s120 = smul.addr %s119, 8
          %s121 = scalar_lea.vmem [#allocation2], %s120
          %s123 = ssub.s32 128, 128
          %124 = vsyncadd %s118, %s123
          %s125 = smul.addr %s17, 128
          %s126 = scalar_lea.hbm %s0, %s125
          %s128 = sshll.u32 %s121, 4
          %s129 = int_to_ptr.vmem [resolvable:$true] %s128
          %131 = dma.hbm_to_vmem [thread:$0]  %s126, 128, %s129, %s118
        $region20: #{tpu_custom_call.1} parent=15 // pred_fallthru
          _
        // Predicated region
        $region21: #{tpu_custom_call.1} parent=15 // pred_check
          %p132 = pneg %p63
        $region22: #{tpu_custom_call.1} parent=15 // pred_check_branch
          %134 = sbr.rel (%p132) target = $region24
        $region23: #{tpu_custom_call.1} parent=15 // pred_region
          %s135 = sand.u32 %s53, 1
          %s136 = scalar_lea.sflag [#allocation6], %s135
          %s137 = sand.u32 %s53, 1
          %s138 = smul.addr %s137, 8
          %s139 = scalar_lea.vmem [#allocation5], %s138
          %s141 = ssub.s32 128, 128
          %142 = vsyncadd %s136, %s141
          %s143 = smul.addr %s17, 128
          %s144 = scalar_lea.hbm %s1, %s143
          %s146 = sshll.u32 %s139, 4
          %s147 = int_to_ptr.vmem [resolvable:$true] %s146
          %149 = dma.hbm_to_vmem [thread:$0]  %s144, 128, %s147, %s136
        $region24: #{tpu_custom_call.1} parent=15 // pred_fallthru
          _
      $region16: #{tpu_custom_call.1} parent=5 // pred_fallthru
        _
      %p150 = scmp.le.s32.totalorder 1, %s17
      %p151 = scmp.lt.s32.totalorder %s17, 3
      %p152 = pnand %p150, %p151
      %p153 = pneg %p152
      // Predicated region
      $region25: #{tpu_custom_call.1} parent=5 // pred_check
        _
      $region26: #{tpu_custom_call.1} parent=5 // pred_check_branch
        %155 = sbr.rel (%p152) target = $region28
      $region27: #{tpu_custom_call.1} parent=5 // pred_region
        %s156 = ssub.s32 %s17, 1
        %s157 = sand.u32 %s30, 1
        %s158 = scalar_lea.sflag [#allocation3], %s157
        %s159 = sand.u32 %s30, 1
        %s160 = smul.addr %s159, 8
        %s161 = scalar_lea.vmem [#allocation2], %s160
        // Predicated region
        $region29: #{tpu_custom_call.1} parent=27 // pred_check
          %p162 = pneg %p43
        $region30: #{tpu_custom_call.1} parent=27 // pred_check_branch
          %164 = sbr.rel (%p162) target = $region32
        $region31: #{tpu_custom_call.1} parent=27 // pred_region
          %165 = dma.done %s158, 128
        $region32: #{tpu_custom_call.1} parent=27 // pred_fallthru
          _
        %s166 = sand.u32 %s56, 1
        %s167 = scalar_lea.sflag [#allocation6], %s166
        %s168 = sand.u32 %s56, 1
        %s169 = smul.addr %s168, 8
        %s170 = scalar_lea.vmem [#allocation5], %s169
        // Predicated region
        $region33: #{tpu_custom_call.1} parent=27 // pred_check
          %p171 = pneg %p69
        $region34: #{tpu_custom_call.1} parent=27 // pred_check_branch
          %173 = sbr.rel (%p171) target = $region36
        $region35: #{tpu_custom_call.1} parent=27 // pred_region
          %174 = dma.done %s167, 128
        $region36: #{tpu_custom_call.1} parent=27 // pred_fallthru
          _
        %s175 = sand.u32 %s30, 1
        %s176 = scalar_lea.sflag [#allocation3], %s175
        %s177 = sand.u32 %s30, 1
        %s178 = smul.addr %s177, 8
        %s179 = scalar_lea.vmem [#allocation2], %s178
        %p180 = pneg %p43
        %p181 = pneg %p40
        %s182 = sand.u32 %s56, 1
        %s183 = scalar_lea.sflag [#allocation6], %s182
        %s184 = sand.u32 %s56, 1
        %s185 = smul.addr %s184, 8
        %s186 = scalar_lea.vmem [#allocation5], %s185
        %p187 = pneg %p69
        %p188 = pneg %p66
        %p189 = pneg %p95
        %p190 = pneg %p92
        %s191 = sand.u32 %s82, 1
        %s192 = scalar_lea.sflag [#allocation4], %s191
        %s193 = sand.u32 %s82, 1
        %s194 = smul.addr %s193, 8
        %s195 = scalar_lea.vmem [#allocation7], %s194
        %v196 = vld [vmem:[%s161] sm:$0xff]
        %v197 = vld [vmem:[%s170] sm:$0xff]
        %v198 = vsub.f32 %v196, %v197
        %v199 = vand.u32 2147483647, %v198
        %vm200 = vcmp.lt.f32.partialorder %v199, 1.0
        %v201 = vmul.f32 %v199, %v199
        %v202 = vsel %vm200, %v201, %v199
        %vm203 = vmxor %vm200, 1
        %vm204 = vcmp.le.f32.partialorder %v202, 3.0
        %vm205 = vmand %vm203, %vm204
        %v206 = vsub.f32 %v202, 1.0
        %v207 = vmul.f32 %v206, 0.25
        %v208 = vsub.f32 2.0, %v207
        %v209 = vmul.f32 %v206, %v208
        %v210 = vadd.f32 %v209, 1.0
        %v211 = vsel %vm205, %v210, %v202
        %vm212 = vcmp.gt.f32.partialorder %v211, 3.0
        %v213 = vadd.f32 %v211, 1.0
        %v214 = vsel %vm212, %v213, %v211
        %v215 = vadd.f32 %v214, 0.0
        %216 = vst [vmem:[%s195] sm:$0xff] %v215
        %s217 = sand.u32 %s82, 1
        %s218 = scalar_lea.sflag [#allocation4], %s217
        %s219 = sand.u32 %s82, 1
        %s220 = smul.addr %s219, 8
        %s221 = scalar_lea.vmem [#allocation7], %s220
        // Predicated region
        $region37: #{tpu_custom_call.1} parent=27 // pred_check
          %p222 = pneg %p92
        $region38: #{tpu_custom_call.1} parent=27 // pred_check_branch
          %224 = sbr.rel (%p222) target = $region40
        $region39: #{tpu_custom_call.1} parent=27 // pred_region
          %s226 = ssub.s32 128, 128
          %227 = vsyncadd %s218, %s226
          %s228 = smul.addr %s22, 128
          %s229 = scalar_lea.hbm %s2, %s228
          %s231 = sshll.u32 %s221, 4
          %s232 = int_to_ptr.vmem [resolvable:$true] %s231
          %234 = dma.vmem_to_hbm [thread:$0]  %s232, 128, %s229, %s218
        $region40: #{tpu_custom_call.1} parent=27 // pred_fallthru
          _
      $region28: #{tpu_custom_call.1} parent=5 // pred_fallthru
        _
      %p235 = scmp.le.s32.totalorder 2, %s17
      // Predicated region
      $region41: #{tpu_custom_call.1} parent=5 // pred_check
        %p236 = pneg %p235
      $region42: #{tpu_custom_call.1} parent=5 // pred_check_branch
        %238 = sbr.rel (%p236) target = $region44
      $region43: #{tpu_custom_call.1} parent=5 // pred_region
        %s239 = ssub.s32 %s17, 2
        // Predicated region
        $region45: #{tpu_custom_call.1} parent=43 // pred_check
          %p240 = pneg %p98
        $region46: #{tpu_custom_call.1} parent=43 // pred_check_branch
          %242 = sbr.rel (%p240) target = $region48
        $region47: #{tpu_custom_call.1} parent=43 // pred_region
          %s243 = sand.u32 %s83, 1
          %s244 = scalar_lea.sflag [#allocation4], %s243
          %s245 = sand.u32 %s83, 1
          %s246 = smul.addr %s245, 8
          %s247 = scalar_lea.vmem [#allocation7], %s246
          %248 = dma.done %s244, 128
        $region48: #{tpu_custom_call.1} parent=43 // pred_fallthru
          _
      $region44: #{tpu_custom_call.1} parent=5 // pred_fallthru
        _
    $region6: #{tpu_custom_call.1} parent=1 // loop_footer
      %s21 = sadd.s32 1, %s17
    $region7: #{tpu_custom_call.1} parent=1 // loop_footer_branch
      %16 = sbr.rel target = $region3
    $region8: #{tpu_custom_call.1} parent=1 // loop_exit
      _
    %249 = vsyncpa [#allocation3], 1
    %s250 = scalar_lea.sflag [#allocation3], 1
    %251 = vsyncpa %s250, 1
    %252 = vsyncpa [#allocation6], 1
    %s253 = scalar_lea.sflag [#allocation6], 1
    %254 = vsyncpa %s253, 1
    %255 = vsyncpa [#allocation4], 1
    %s256 = scalar_lea.sflag [#allocation4], 1
    %257 = vsyncpa %s256, 1

</llo_original>
